<compile_context>
chip_gen: v7x
topology: tpu7x:2x2x1
jax: 0.10.0
libtpu: 0.0.40
codegen_flags: <defaults>
</compile_context>

<pallas_src>
import jax
import jax.numpy as jnp
from jax.experimental import pallas as pl
from jax.experimental.pallas import tpu as pltpu


def _round_up(n, m):
    return ((n + m - 1) // m) * m


def _particle_mlp_kernel(x_ref, w1_ref, b1_ref, w2_ref, b2_ref, o_ref):
    """One (particle, batch-tile) step of the fused 2-layer MLP.

    x_ref : (TB, D_IN)   bf16   shared activations
    w1_ref: (D_IN, HID)  bf16   per-particle layer-1 weights
    b1_ref: (1, HID)     f32
    w2_ref: (HID, D_OUT) bf16
    b2_ref: (1, D_OUT)   f32
    o_ref : (TB, D_OUT)  f32    lane-dense output tile
    """
    # Layer 1 on the MXU (bf16 inputs, f32 accumulation).
    h = jnp.dot(x_ref[...], w1_ref[...], preferred_element_type=jnp.float32)
    # Bias + ReLU in f32 on the VPU.
    h = jnp.maximum(h + b1_ref[...], 0.0)
    # Layer 2 on the MXU.
    y = jnp.dot(h.astype(w2_ref.dtype), w2_ref[...],
                preferred_element_type=jnp.float32)
    o_ref[...] = (y + b2_ref[...]).astype(o_ref.dtype)


def particles_forward(x, w1, b1, w2, b2, *, batch_tile=256,
                      matmul_dtype=jnp.bfloat16):
    """Fused forward of P CBO particles (each an independent 2-layer MLP).

    x : [B, D_IN] f32            shared input batch
    w1: [P, D_IN, HID] f32       per-particle parameters (i.i.d. normal init)
    b1: [P, 1, HID] f32
    w2: [P, HID, D_OUT] f32
    b2: [P, 1, D_OUT] f32
    returns [P, B, D_OUT] f32
    """
    P, D_IN, HID = w1.shape
    D_OUT = w2.shape[2]
    B = x.shape[0]

    # Align feature dims to the 128-lane axis and batch to the 8-sublane axis.
    d_in_p = _round_up(D_IN, 128)
    hid_p = _round_up(HID, 128)
    d_out_p = _round_up(D_OUT, 128)
    tb = batch_tile if B >= batch_tile else _round_up(B, 8)
    b_p = _round_up(B, tb)

    # Zero-padding is inert through matmul / bias / ReLU; cast matmul operands
    # to bf16 once here, keep biases f32.
    xq = jnp.pad(x, ((0, b_p - B), (0, d_in_p - D_IN))).astype(matmul_dtype)
    w1q = jnp.pad(w1, ((0, 0), (0, d_in_p - D_IN),
                       (0, hid_p - HID))).astype(matmul_dtype)
    b1p = jnp.pad(b1, ((0, 0), (0, 0), (0, hid_p - HID)))
    w2q = jnp.pad(w2, ((0, 0), (0, hid_p - HID),
                       (0, d_out_p - D_OUT))).astype(matmul_dtype)
    b2p = jnp.pad(b2, ((0, 0), (0, 0), (0, d_out_p - D_OUT)))

    n_b = b_p // tb
    grid = (P, n_b)  # batch innermost -> weights resident across batch tiles

    flops = 2 * P * b_p * (d_in_p * hid_p + hid_p * d_out_p)
    bytes_accessed = (
        xq.size * xq.dtype.itemsize
        + w1q.size * w1q.dtype.itemsize + w2q.size * w2q.dtype.itemsize
        + b1p.size * 4 + b2p.size * 4
        + P * b_p * d_out_p * 4)

    out = pl.pallas_call(
        _particle_mlp_kernel,
        out_shape=jax.ShapeDtypeStruct((P, b_p, d_out_p), jnp.float32),
        grid=grid,
        in_specs=[
            # x is shared: block index constant along the particle axis.
            pl.BlockSpec((tb, d_in_p), lambda p, b: (b, 0)),
            # Per-particle parameters: constant along the (inner) batch axis,
            # so Pallas fetches them once per particle.
            pl.BlockSpec((None, d_in_p, hid_p), lambda p, b: (p, 0, 0)),
            pl.BlockSpec((None, 1, hid_p), lambda p, b: (p, 0, 0)),
            pl.BlockSpec((None, hid_p, d_out_p), lambda p, b: (p, 0, 0)),
            pl.BlockSpec((None, 1, d_out_p), lambda p, b: (p, 0, 0)),
        ],
        out_specs=pl.BlockSpec((None, tb, d_out_p), lambda p, b: (p, b, 0)),
        compiler_params=pltpu.CompilerParams(
            dimension_semantics=("parallel", "arbitrary"),
            vmem_limit_bytes=32 * 1024 * 1024,
        ),
        cost_estimate=pl.CostEstimate(
            flops=flops, transcendentals=0, bytes_accessed=bytes_accessed),
    )(xq, w1q, b1p, w2q, b2p)

    # Strip the alignment padding.
    return out[:, :B, :D_OUT]


def reference_forward(x, w1, b1, w2, b2, matmul_dtype=jnp.bfloat16):
    """Plain-JAX reference with matched precision (bf16 matmul, f32 accum)."""
    xq = x.astype(matmul_dtype)
    w1q = w1.astype(matmul_dtype)
    w2q = w2.astype(matmul_dtype)
    h = jnp.einsum("bi,pih->pbh", xq, w1q,
                   preferred_element_type=jnp.float32) + b1
    h = jnp.maximum(h, 0.0)
    y = jnp.einsum("pbh,pho->pbo", h.astype(matmul_dtype), w2q,
                   preferred_element_type=jnp.float32) + b2
    return y


if __name__ == "__main__":
    # Small MLP-classifier particle shapes (consistent with cbo_in_python);
    # the wrapper pads everything up to (8, 128)-aligned tiles internally.
    P, B, D_IN, HID, D_OUT = 8, 8, 32, 64, 16

    key = jax.random.PRNGKey(0)
    kx, k1, k2, k3, k4 = jax.random.split(key, 5)

    # Shared input batch (e.g. a flattened image batch).
    x = jax.random.normal(kx, (B, D_IN), dtype=jnp.float32)

    # Per-particle parameters: Particle.__init__ (non-restore branch) replaces
    # every model parameter with i.i.d. standard-normal samples; here each of
    # the P particles gets its own deterministic normal draw.
    w1 = jax.random.normal(k1, (P, D_IN, HID), dtype=jnp.float32)
    b1 = jax.random.normal(k2, (P, 1, HID), dtype=jnp.float32)
    w2 = jax.random.normal(k3, (P, HID, D_OUT), dtype=jnp.float32)
    b2 = jax.random.normal(k4, (P, 1, D_OUT), dtype=jnp.float32)

    out = particles_forward(x, w1, b1, w2, b2)
    out = jax.block_until_ready(out)

    ref = reference_forward(x, w1, b1, w2, b2)
    assert out.shape == (P, B, D_OUT)
    assert jnp.allclose(out, ref, atol=1e-2, rtol=1e-2), "mismatch vs reference"

    # TODO(synk): the fmu=True branch (FMU co-simulation pointers) has no
    # array-level forward pass and therefore no Pallas equivalent.
    print("KERNEL_OK")
</pallas_src>

<mosaic_0001>
module attributes {stable_mosaic.version = 11 : i64} {
  func.func @_particle_mlp_kernel(%arg0: i32, %arg1: i32, %arg2: memref<8x128xbf16, #tpu.memory_space<vmem>>, %arg3: memref<1x128x128xbf16, #tpu.memory_space<vmem>>, %arg4: memref<1x1x128xf32, #tpu.memory_space<vmem>>, %arg5: memref<1x128x128xbf16, #tpu.memory_space<vmem>>, %arg6: memref<1x1x128xf32, #tpu.memory_space<vmem>>, %arg7: memref<1x8x128xf32, #tpu.memory_space<vmem>>) attributes {dimension_semantics = [#tpu.dimension_semantics<parallel>, #tpu.dimension_semantics<arbitrary>], iteration_bounds = array<i64: 8, 1>, scalar_prefetch = 0 : i64, scratch_operands = 0 : i64, tpu.core_type = #tpu.core_type<tc>, window_params = [{transform_indices = @transform_0, window_bounds = array<i64: 8, 128>}, {transform_indices = @transform_1, window_bounds = array<i64: 1, 128, 128>}, {transform_indices = @transform_2, window_bounds = array<i64: 1, 1, 128>}, {transform_indices = @transform_3, window_bounds = array<i64: 1, 128, 128>}, {transform_indices = @transform_4, window_bounds = array<i64: 1, 1, 128>}, {transform_indices = @transform_5, window_bounds = array<i64: 1, 8, 128>}]} {
    %c0 = arith.constant 0 : index
    %c0_0 = arith.constant 0 : index
    %0 = vector.load %arg2[%c0, %c0_0] : memref<8x128xbf16, #tpu.memory_space<vmem>>, vector<8x128xbf16>
    %c0_1 = arith.constant 0 : index
    %c0_2 = arith.constant 0 : index
    %c0_3 = arith.constant 0 : index
    %1 = vector.load %arg3[%c0_1, %c0_2, %c0_3] : memref<1x128x128xbf16, #tpu.memory_space<vmem>>, vector<1x128x128xbf16>
    %2 = vector.shape_cast %1 : vector<1x128x128xbf16> to vector<128x128xbf16>
    %cst = arith.constant dense<0.000000e+00> : vector<8x128xf32>
    %3 = tpu.matmul %0, %2, %cst {dimension_numbers = #tpu.dot_dimension_numbers<[1], [0], [0], [1], [0, 0, 1, 1], [], []>} : vector<8x128xbf16>, vector<128x128xbf16>, vector<8x128xf32> -> vector<8x128xf32>
    %c0_4 = arith.constant 0 : index
    %c0_5 = arith.constant 0 : index
    %c0_6 = arith.constant 0 : index
    %4 = vector.load %arg4[%c0_4, %c0_5, %c0_6] : memref<1x1x128xf32, #tpu.memory_space<vmem>>, vector<1x1x128xf32>
    %5 = vector.shape_cast %4 : vector<1x1x128xf32> to vector<1x128xf32>
    %6 = vector.broadcast %5 : vector<1x128xf32> to vector<8x128xf32>
    %7 = arith.addf %3, %6 : vector<8x128xf32>
    %cst_7 = arith.constant 0.000000e+00 : f32
    %8 = vector.broadcast %cst_7 : f32 to vector<8x128xf32>
    %9 = arith.maximumf %7, %8 : vector<8x128xf32>
    %10 = arith.truncf %9 : vector<8x128xf32> to vector<8x128xbf16>
    %c0_8 = arith.constant 0 : index
    %c0_9 = arith.constant 0 : index
    %c0_10 = arith.constant 0 : index
    %11 = vector.load %arg5[%c0_8, %c0_9, %c0_10] : memref<1x128x128xbf16, #tpu.memory_space<vmem>>, vector<1x128x128xbf16>
    %12 = vector.shape_cast %11 : vector<1x128x128xbf16> to vector<128x128xbf16>
    %cst_11 = arith.constant dense<0.000000e+00> : vector<8x128xf32>
    %13 = tpu.matmul %10, %12, %cst_11 {dimension_numbers = #tpu.dot_dimension_numbers<[1], [0], [0], [1], [0, 0, 1, 1], [], []>} : vector<8x128xbf16>, vector<128x128xbf16>, vector<8x128xf32> -> vector<8x128xf32>
    %c0_12 = arith.constant 0 : index
    %c0_13 = arith.constant 0 : index
    %c0_14 = arith.constant 0 : index
    %14 = vector.load %arg6[%c0_12, %c0_13, %c0_14] : memref<1x1x128xf32, #tpu.memory_space<vmem>>, vector<1x1x128xf32>
    %15 = vector.shape_cast %14 : vector<1x1x128xf32> to vector<1x128xf32>
    %16 = vector.broadcast %15 : vector<1x128xf32> to vector<8x128xf32>
    %17 = arith.addf %13, %16 : vector<8x128xf32>
    %c0_15 = arith.constant 0 : index
    %c0_16 = arith.constant 0 : index
    %c0_17 = arith.constant 0 : index
    %18 = vector.load %arg7[%c0_15, %c0_16, %c0_17] : memref<1x8x128xf32, #tpu.memory_space<vmem>>, vector<1x8x128xf32>
    %19 = vector.shape_cast %18 : vector<1x8x128xf32> to vector<8x128xf32>
    %20 = vector.shape_cast %17 : vector<8x128xf32> to vector<1x8x128xf32>
    tpu.vector_store %arg7[%c0_15, %c0_16, %c0_17], %20 {strides = array<i32>} : memref<1x8x128xf32, #tpu.memory_space<vmem>>, vector<1x8x128xf32>,
    return
  }
  func.func @transform_0(%arg0: i32, %arg1: i32) -> (i32, i32) {
    %c0_i32 = arith.constant 0 : i32
    %c0_i32_0 = arith.constant 0 : i32
    return %arg1, %c0_i32 : i32, i32
  }
  func.func @transform_1(%arg0: i32, %arg1: i32) -> (i32, i32, i32) {
    %c0_i32 = arith.constant 0 : i32
    %c0_i32_0 = arith.constant 0 : i32
    %c0_i32_1 = arith.constant 0 : i32
    return %arg0, %c0_i32, %c0_i32_0 : i32, i32, i32
  }
  func.func @transform_2(%arg0: i32, %arg1: i32) -> (i32, i32, i32) {
    %c0_i32 = arith.constant 0 : i32
    %c0_i32_0 = arith.constant 0 : i32
    %c0_i32_1 = arith.constant 0 : i32
    return %arg0, %c0_i32, %c0_i32_0 : i32, i32, i32
  }
  func.func @transform_3(%arg0: i32, %arg1: i32) -> (i32, i32, i32) {
    %c0_i32 = arith.constant 0 : i32
    %c0_i32_0 = arith.constant 0 : i32
    %c0_i32_1 = arith.constant 0 : i32
    return %arg0, %c0_i32, %c0_i32_0 : i32, i32, i32
  }
  func.func @transform_4(%arg0: i32, %arg1: i32) -> (i32, i32, i32) {
    %c0_i32 = arith.constant 0 : i32
    %c0_i32_0 = arith.constant 0 : i32
    %c0_i32_1 = arith.constant 0 : i32
    return %arg0, %c0_i32, %c0_i32_0 : i32, i32, i32
  }
  func.func @transform_5(%arg0: i32, %arg1: i32) -> (i32, i32, i32) {
    %c0_i32 = arith.constant 0 : i32
    %c0_i32_0 = arith.constant 0 : i32
    return %arg0, %arg1, %c0_i32 : i32, i32, i32
  }
}

</mosaic_0001>

<llo_original>
// kernel: tpu_custom_call.1
$region0: #{tpu_custom_call.1}
  #allocation0 [shape = 'u32[]', space=smem, size = 0x4, offset = 0x4, fixed_abs, tag = 'smem constant byte address 0x4 - core index']
  #allocation1 [shape = 'u32[144,128]{1,0:T(1,128)}', space=vmem, size = 0x12000, scoped, tag = 'internal scratch']
  %s0 = inlined_call_operand.hbm [shape: bf16[8,128], index: 0, kind: input, shape index: {}]
  %s1 = inlined_call_operand.hbm [shape: bf16[8,128,128], index: 1, kind: input, shape index: {}]
  %s2 = inlined_call_operand.hbm [shape: f32[8,1,128], index: 2, kind: input, shape index: {}]
  %s3 = inlined_call_operand.hbm [shape: bf16[8,128,128], index: 3, kind: input, shape index: {}]
  %s4 = inlined_call_operand.vmem [shape: f32[8,1,128], index: 4, kind: input, shape index: {}]
  %s5 = inlined_call_operand.hbm [shape: f32[8,8,128], index: 5, kind: output, shape index: {}]
  %s6 = sld [smem:[#allocation0]]
  $region69: #{tpu_custom_call.1} parent=0
    _
  %s8 = ssub.s32 1, %s6
  %s9 = scalar_select 0, %s8, %s6
  $region1: #{tpu_custom_call.1} parent=0
    #allocation2 [shape = 'u8[2048]{0}', space=vmem, size = 0x800, scoped, tag = 'input window, operand 0, single buffered']
    #allocation3 [shape = 's32[2]{0}', space=sflag, size = 0x8, scoped, tag = 'scoped memory for tpu_custom_call.1']
    #allocation4 [shape = 's32[2]{0}', space=sflag, size = 0x8, scoped, tag = 'scoped memory for tpu_custom_call.1']
    #allocation5 [shape = 'u8[65536]{0}', space=vmem, size = 0x10000, scoped, tag = 'input window, operand 1']
    #allocation6 [shape = 's32[2]{0}', space=sflag, size = 0x8, scoped, tag = 'scoped memory for tpu_custom_call.1']
    #allocation7 [shape = 'u8[1024]{0}', space=vmem, size = 0x400, scoped, tag = 'input window, operand 2']
    #allocation8 [shape = 'u8[65536]{0}', space=vmem, size = 0x10000, scoped, tag = 'input window, operand 3']
    #allocation9 [shape = 's32[2]{0}', space=sflag, size = 0x8, scoped, tag = 'scoped memory for tpu_custom_call.1']
    #allocation10 [shape = 'u8[8192]{0}', space=vmem, size = 0x2000, scoped, tag = 'output window, operand 0']
    %10 = vsyncpa [#allocation3], 0
    %11 = vsyncpa [#allocation6], 0
    %s12 = scalar_lea.sflag [#allocation6], 1
    %13 = vsyncpa %s12, 0
    %14 = vsyncpa [#allocation9], 0
    %s15 = scalar_lea.sflag [#allocation9], 1
    %16 = vsyncpa %s15, 0
    %17 = vsyncpa [#allocation4], 0
    %s18 = scalar_lea.sflag [#allocation4], 1
    %19 = vsyncpa %s18, 0
    loop: start=0, step=1, limit=10
    $region2: #{tpu_custom_call.1} parent=1 // loop_pre_header
      _
    $region3: #{tpu_custom_call.1} parent=1 // loop_header
      %s21 = sphi 0, %s25
      %p22 = scmp.ge.s32.totalorder %s21, 10
      %s28 = sphi 0, %s40
      %s29 = sphi 0, %s36
      %s30 = sphi 0, %s28
      %s31 = sphi 0, %s29
      %s32 = sphi 0, %s30
      %s33 = sphi 0, %s31
      %s43 = sphi 0, %s45
      %s46 = sphi 0, %s43
      %s47 = sphi 0, %s46
      %s63 = sphi 0, %s47
      %s69 = sphi 0, %s71
      %s72 = sphi 0, %s69
      %s73 = sphi 0, %s72
      %s89 = sphi 0, %s73
      %s95 = sphi 0, %s97
      %s98 = sphi 0, %s95
      %s99 = sphi 0, %s98
      %s115 = sphi 0, %s99
      %s121 = sphi 0, %s123
      %s124 = sphi 0, %s121
      %s125 = sphi 0, %s124
      %s141 = sphi 0, %s125
      %s147 = sphi 0, %s149
      %s150 = sphi 0, %s147
      %s151 = sphi 0, %s150
      %s167 = sphi 0, %s151
      %s175 = sphi 0, %s177
      %s178 = sphi 0, %s175
      %s179 = sphi 0, %s178
      %s195 = sphi 0, %s179
    $region4: #{tpu_custom_call.1} parent=1 // loop_header_branch
      %24 = sbr.rel (%p22) target = $region8
    $region5: #{tpu_custom_call.1} parent=1 // loop_body
      %s26 = ssub.s32 %s21, 1
      %s27 = ssub.s32 %s21, 2
      %s34 = sadd.s32 1, %s29
      %p35 = scmp.ge.s32.totalorder %s34, 1
      %s36 = scalar_select %p35, 0, %s34
      %s37 = sadd.s32 1, %s28
      %s38 = scalar_select %p35, %s37, %s28
      %p39 = scmp.ge.s32.totalorder %s38, 8
      %s40 = scalar_select %p39, 0, %s38
      %s41 = ssub.s32 %s29, %s36
      %p42 = scmp.eq.s32.totalorder %s41, 0
      %s44 = sadd.s32 %s43, 1
      %s45 = scalar_select %p42, %s43, %s44
      %p48 = pneg %p42
      %p49 = scmp.eq.s32.totalorder %s21, 7
      %p50 = por %p48, %p49
      %p51 = scmp.ne.s32.totalorder %s43, %s46
      %p52 = scmp.eq.s32.totalorder %s21, 0
      %p53 = por %p51, %p52
      %p54 = scmp.ne.s32.totalorder %s43, %s46
      %p55 = scmp.eq.s32.totalorder %s26, 7
      %p56 = por %p54, %p55
      %p57 = scmp.ne.s32.totalorder %s46, %s47
      %p58 = scmp.eq.s32.totalorder %s26, 0
      %p59 = por %p57, %p58
      %p60 = scmp.ne.s32.totalorder %s46, %s47
      %p61 = scmp.eq.s32.totalorder %s27, 7
      %p62 = por %p60, %p61
      %p64 = scmp.ne.s32.totalorder %s47, %s63
      %p65 = scmp.eq.s32.totalorder %s27, 0
      %p66 = por %p64, %p65
      %s67 = ssub.s32 %s28, %s40
      %p68 = scmp.eq.s32.totalorder %s67, 0
      %s70 = sadd.s32 %s69, 1
      %s71 = scalar_select %p68, %s69, %s70
      %p74 = pneg %p68
      %p75 = scmp.eq.s32.totalorder %s21, 7
      %p76 = por %p74, %p75
      %p77 = scmp.ne.s32.totalorder %s69, %s72
      %p78 = scmp.eq.s32.totalorder %s21, 0
      %p79 = por %p77, %p78
      %p80 = scmp.ne.s32.totalorder %s69, %s72
      %p81 = scmp.eq.s32.totalorder %s26, 7
      %p82 = por %p80, %p81
      %p83 = scmp.ne.s32.totalorder %s72, %s73
      %p84 = scmp.eq.s32.totalorder %s26, 0
      %p85 = por %p83, %p84
      %p86 = scmp.ne.s32.totalorder %s72, %s73
      %p87 = scmp.eq.s32.totalorder %s27, 7
      %p88 = por %p86, %p87
      %p90 = scmp.ne.s32.totalorder %s73, %s89
      %p91 = scmp.eq.s32.totalorder %s27, 0
      %p92 = por %p90, %p91
      %s93 = ssub.s32 %s28, %s40
      %p94 = scmp.eq.s32.totalorder %s93, 0
      %s96 = sadd.s32 %s95, 1
      %s97 = scalar_select %p94, %s95, %s96
      %p100 = pneg %p94
      %p101 = scmp.eq.s32.totalorder %s21, 7
      %p102 = por %p100, %p101
      %p103 = scmp.ne.s32.totalorder %s95, %s98
      %p104 = scmp.eq.s32.totalorder %s21, 0
      %p105 = por %p103, %p104
      %p106 = scmp.ne.s32.totalorder %s95, %s98
      %p107 = scmp.eq.s32.totalorder %s26, 7
      %p108 = por %p106, %p107
      %p109 = scmp.ne.s32.totalorder %s98, %s99
      %p110 = scmp.eq.s32.totalorder %s26, 0
      %p111 = por %p109, %p110
      %p112 = scmp.ne.s32.totalorder %s98, %s99
      %p113 = scmp.eq.s32.totalorder %s27, 7
      %p114 = por %p112, %p113
      %p116 = scmp.ne.s32.totalorder %s99, %s115
      %p117 = scmp.eq.s32.totalorder %s27, 0
      %p118 = por %p116, %p117
      %s119 = ssub.s32 %s28, %s40
      %p120 = scmp.eq.s32.totalorder %s119, 0
      %s122 = sadd.s32 %s121, 1
      %s123 = scalar_select %p120, %s121, %s122
      %p126 = pneg %p120
      %p127 = scmp.eq.s32.totalorder %s21, 7
      %p128 = por %p126, %p127
      %p129 = scmp.ne.s32.totalorder %s121, %s124
      %p130 = scmp.eq.s32.totalorder %s21, 0
      %p131 = por %p129, %p130
      %p132 = scmp.ne.s32.totalorder %s121, %s124
      %p133 = scmp.eq.s32.totalorder %s26, 7
      %p134 = por %p132, %p133
      %p135 = scmp.ne.s32.totalorder %s124, %s125
      %p136 = scmp.eq.s32.totalorder %s26, 0
      %p137 = por %p135, %p136
      %p138 = scmp.ne.s32.totalorder %s124, %s125
      %p139 = scmp.eq.s32.totalorder %s27, 7
      %p140 = por %p138, %p139
      %p142 = scmp.ne.s32.totalorder %s125, %s141
      %p143 = scmp.eq.s32.totalorder %s27, 0
      %p144 = por %p142, %p143
      %s145 = ssub.s32 %s28, %s40
      %p146 = scmp.eq.s32.totalorder %s145, 0
      %s148 = sadd.s32 %s147, 1
      %s149 = scalar_select %p146, %s147, %s148
      %p152 = pneg %p146
      %p153 = scmp.eq.s32.totalorder %s21, 7
      %p154 = por %p152, %p153
      %p155 = scmp.ne.s32.totalorder %s147, %s150
      %p156 = scmp.eq.s32.totalorder %s21, 0
      %p157 = por %p155, %p156
      %p158 = scmp.ne.s32.totalorder %s147, %s150
      %p159 = scmp.eq.s32.totalorder %s26, 7
      %p160 = por %p158, %p159
      %p161 = scmp.ne.s32.totalorder %s150, %s151
      %p162 = scmp.eq.s32.totalorder %s26, 0
      %p163 = por %p161, %p162
      %p164 = scmp.ne.s32.totalorder %s150, %s151
      %p165 = scmp.eq.s32.totalorder %s27, 7
      %p166 = por %p164, %p165
      %p168 = scmp.ne.s32.totalorder %s151, %s167
      %p169 = scmp.eq.s32.totalorder %s27, 0
      %p170 = por %p168, %p169
      %s171 = ssub.s32 %s28, %s40
      %s172 = ssub.s32 %s29, %s36
      %s173 = sor.u32 %s171, %s172
      %p174 = scmp.eq.s32.totalorder %s173, 0
      %s176 = sadd.s32 %s175, 1
      %s177 = scalar_select %p174, %s175, %s176
      %p180 = pneg %p174
      %p181 = scmp.eq.s32.totalorder %s21, 7
      %p182 = por %p180, %p181
      %p183 = scmp.ne.s32.totalorder %s175, %s178
      %p184 = scmp.eq.s32.totalorder %s21, 0
      %p185 = por %p183, %p184
      %p186 = scmp.ne.s32.totalorder %s175, %s178
      %p187 = scmp.eq.s32.totalorder %s26, 7
      %p188 = por %p186, %p187
      %p189 = scmp.ne.s32.totalorder %s178, %s179
      %p190 = scmp.eq.s32.totalorder %s26, 0
      %p191 = por %p189, %p190
      %p192 = scmp.ne.s32.totalorder %s178, %s179
      %p193 = scmp.eq.s32.totalorder %s27, 7
      %p194 = por %p192, %p193
      %p196 = scmp.ne.s32.totalorder %s179, %s195
      %p197 = scmp.eq.s32.totalorder %s27, 0
      %p198 = por %p196, %p197
      %p199 = scmp.le.s32.totalorder 1, %s21
      %p200 = scmp.lt.s32.totalorder %s21, 9
      %p201 = pnand %p199, %p200
      %p202 = pneg %p201
      // Predicated region
      $region9: #{tpu_custom_call.1} parent=5 // pred_check
        _
      $region10: #{tpu_custom_call.1} parent=5 // pred_check_branch
        %204 = sbr.rel (%p201) target = $region12
      $region11: #{tpu_custom_call.1} parent=5 // pred_region
        %s205 = ssub.s32 %s21, 1
        // Predicated region
        $region13: #{tpu_custom_call.1} parent=11 // pred_check
          %p206 = pneg %p59
        $region14: #{tpu_custom_call.1} parent=11 // pred_check_branch
          %208 = sbr.rel (%p206) target = $region16
        $region15: #{tpu_custom_call.1} parent=11 // pred_region
          %s210 = ssub.s32 64, 64
          %211 = vsyncadd [#allocation3], %s210
          %s212 = smul.addr %s31, 64
          %s213 = scalar_lea.hbm %s0, %s212
          %s215 = sshll.u32 [#allocation2], 4
          %s216 = int_to_ptr.vmem [resolvable:$true] %s215
          %218 = dma.hbm_to_vmem [thread:$0]  %s213, 64, %s216, [#allocation3]
        $region16: #{tpu_custom_call.1} parent=11 // pred_fallthru
          _
      $region12: #{tpu_custom_call.1} parent=5 // pred_fallthru
        _
      %p219 = scmp.lt.s32.totalorder %s21, 8
      // Predicated region
      $region17: #{tpu_custom_call.1} parent=5 // pred_check
        %p220 = pneg %p219
      $region18: #{tpu_custom_call.1} parent=5 // pred_check_branch
        %222 = sbr.rel (%p220) target = $region20
      $region19: #{tpu_custom_call.1} parent=5 // pred_region
        // Predicated region
        $region21: #{tpu_custom_call.1} parent=19 // pred_check
          %p223 = pneg %p79
        $region22: #{tpu_custom_call.1} parent=19 // pred_check_branch
          %225 = sbr.rel (%p223) target = $region24
        $region23: #{tpu_custom_call.1} parent=19 // pred_region
          %s226 = sand.u32 %s21, 1
          %s227 = scalar_lea.sflag [#allocation6], %s226
          %s228 = sand.u32 %s69, 1
          %s229 = smul.addr %s228, 64
          %s230 = scalar_lea.vmem [#allocation5], %s229
          %s232 = ssub.s32 1024, 1024
          %233 = vsyncadd %s227, %s232
          %s234 = smul.addr %s28, 16
          %s235 = smul.addr %s234, 64
          %s236 = scalar_lea.hbm %s1, %s235
          %s237 = sshll.u32 %s230, 4
          %s238 = int_to_ptr.vmem [resolvable:$true] %s237
          %243 = dma.hbm_to_vmem [thread:$0]  %s236, 1024, %s238, %s227, 64, 64, 4
        $region24: #{tpu_custom_call.1} parent=19 // pred_fallthru
          _
        // Predicated region
        $region25: #{tpu_custom_call.1} parent=19 // pred_check
          %p244 = pneg %p105
        $region26: #{tpu_custom_call.1} parent=19 // pred_check_branch
          %246 = sbr.rel (%p244) target = $region28
        $region27: #{tpu_custom_call.1} parent=19 // pred_region
          %s247 = sand.u32 %s21, 1
          %s248 = scalar_lea.sflag [#allocation6], %s247
          %s249 = sand.u32 %s95, 1
          %s250 = scalar_lea.vmem [#allocation7], %s249
          %s252 = ssub.s32 16, 16
          %253 = vsyncadd %s248, %s252
          %s254 = smul.addr %s28, 16
          %s255 = scalar_lea.hbm %s2, %s254
          %s257 = sshll.u32 %s250, 4
          %s258 = int_to_ptr.vmem [resolvable:$true] %s257
          %260 = dma.hbm_to_vmem [thread:$0]  %s255, 16, %s258, %s248
        $region28: #{tpu_custom_call.1} parent=19 // pred_fallthru
          _
        // Predicated region
        $region29: #{tpu_custom_call.1} parent=19 // pred_check
          %p261 = pneg %p131
        $region30: #{tpu_custom_call.1} parent=19 // pred_check_branch
          %263 = sbr.rel (%p261) target = $region32
        $region31: #{tpu_custom_call.1} parent=19 // pred_region
          %s264 = sand.u32 %s121, 1
          %s265 = scalar_lea.sflag [#allocation9], %s264
          %s266 = sand.u32 %s121, 1
          %s267 = smul.addr %s266, 64
          %s268 = scalar_lea.vmem [#allocation8], %s267
          %s270 = ssub.s32 1024, 1024
          %271 = vsyncadd %s265, %s270
          %s272 = smul.addr %s28, 16
          %s273 = smul.addr %s272, 64
          %s274 = scalar_lea.hbm %s3, %s273
          %s275 = sshll.u32 %s268, 4
          %s276 = int_to_ptr.vmem [resolvable:$true] %s275
          %281 = dma.hbm_to_vmem [thread:$0]  %s274, 1024, %s276, %s265, 64, 64, 4
        $region32: #{tpu_custom_call.1} parent=19 // pred_fallthru
          _
        // Predicated region
        $region33: #{tpu_custom_call.1} parent=19 // pred_check
          %p282 = pneg %p157
        $region34: #{tpu_custom_call.1} parent=19 // pred_check_branch
          %284 = sbr.rel (%p282) target = $region36
        $region35: #{tpu_custom_call.1} parent=19 // pred_region
          %p285 = scmp.lt.s32.totalorder %s28, 7
          %s286 = scalar_select %p285, %s28, 7
          %s287 = scalar_lea.vmem %s4, %s286
        $region36: #{tpu_custom_call.1} parent=19 // pred_fallthru
          _
      $region20: #{tpu_custom_call.1} parent=5 // pred_fallthru
        _
      %p288 = scmp.le.s32.totalorder 1, %s21
      %p289 = scmp.lt.s32.totalorder %s21, 9
      %p290 = pnand %p288, %p289
      %p291 = pneg %p290
      // Predicated region
      $region37: #{tpu_custom_call.1} parent=5 // pred_check
        _
      $region38: #{tpu_custom_call.1} parent=5 // pred_check_branch
        %293 = sbr.rel (%p290) target = $region40
      $region39: #{tpu_custom_call.1} parent=5 // pred_region
        %s294 = ssub.s32 %s21, 1
        // Predicated region
        $region41: #{tpu_custom_call.1} parent=39 // pred_check
          %p295 = pneg %p59
        $region42: #{tpu_custom_call.1} parent=39 // pred_check_branch
          %297 = sbr.rel (%p295) target = $region44
        $region43: #{tpu_custom_call.1} parent=39 // pred_region
          %298 = dma.done [#allocation3], 64
        $region44: #{tpu_custom_call.1} parent=39 // pred_fallthru
          _
        %s299 = sand.u32 %s26, 1
        %s300 = scalar_lea.sflag [#allocation6], %s299
        %s301 = sand.u32 %s72, 1
        %s302 = smul.addr %s301, 64
        %s303 = scalar_lea.vmem [#allocation5], %s302
        // Predicated region
        $region45: #{tpu_custom_call.1} parent=39 // pred_check
          %p304 = pneg %p85
        $region46: #{tpu_custom_call.1} parent=39 // pred_check_branch
          %306 = sbr.rel (%p304) target = $region48
        $region47: #{tpu_custom_call.1} parent=39 // pred_region
          %307 = dma.done %s300, 1024
        $region48: #{tpu_custom_call.1} parent=39 // pred_fallthru
          _
        %s308 = sand.u32 %s26, 1
        %s309 = scalar_lea.sflag [#allocation6], %s308
        %s310 = sand.u32 %s98, 1
        %s311 = scalar_lea.vmem [#allocation7], %s310
        // Predicated region
        $region49: #{tpu_custom_call.1} parent=39 // pred_check
          %p312 = pneg %p111
        $region50: #{tpu_custom_call.1} parent=39 // pred_check_branch
          %314 = sbr.rel (%p312) target = $region52
        $region51: #{tpu_custom_call.1} parent=39 // pred_region
          %315 = dma.done %s309, 16
        $region52: #{tpu_custom_call.1} parent=39 // pred_fallthru
          _
        %s316 = sand.u32 %s124, 1
        %s317 = scalar_lea.sflag [#allocation9], %s316
        %s318 = sand.u32 %s124, 1
        %s319 = smul.addr %s318, 64
        %s320 = scalar_lea.vmem [#allocation8], %s319
        // Predicated region
        $region53: #{tpu_custom_call.1} parent=39 // pred_check
          %p321 = pneg %p137
        $region54: #{tpu_custom_call.1} parent=39 // pred_check_branch
          %323 = sbr.rel (%p321) target = $region56
        $region55: #{tpu_custom_call.1} parent=39 // pred_region
          %324 = dma.done %s317, 1024
        $region56: #{tpu_custom_call.1} parent=39 // pred_fallthru
          _
        %p325 = pneg %p59
        %p326 = pneg %p56
        %s327 = sand.u32 %s26, 1
        %s328 = scalar_lea.sflag [#allocation6], %s327
        %s329 = sand.u32 %s72, 1
        %s330 = smul.addr %s329, 64
        %s331 = scalar_lea.vmem [#allocation5], %s330
        %p332 = pneg %p85
        %p333 = pneg %p82
        %s334 = sand.u32 %s26, 1
        %s335 = scalar_lea.sflag [#allocation6], %s334
        %s336 = sand.u32 %s98, 1
        %s337 = scalar_lea.vmem [#allocation7], %s336
        %p338 = pneg %p111
        %p339 = pneg %p108
        %s340 = sand.u32 %s124, 1
        %s341 = scalar_lea.sflag [#allocation9], %s340
        %s342 = sand.u32 %s124, 1
        %s343 = smul.addr %s342, 64
        %s344 = scalar_lea.vmem [#allocation8], %s343
        %p345 = pneg %p137
        %p346 = pneg %p134
        %p347 = scmp.lt.s32.totalorder %s30, 7
        %s348 = scalar_select %p347, %s30, 7
        %s349 = scalar_lea.vmem %s4, %s348
        %p350 = pneg %p163
        %p351 = pneg %p160
        %p352 = pneg %p191
        %p353 = pneg %p188
        %s354 = sand.u32 %s178, 1
        %s355 = scalar_lea.sflag [#allocation4], %s354
        %s356 = sand.u32 %s178, 1
        %s357 = smul.addr %s356, 8
        %s358 = scalar_lea.vmem [#allocation10], %s357
        %p359 = scmp.lt.s32.totalorder %s30, 7
        %s360 = scalar_select %p359, %s30, 7
        %s361 = scalar_lea.vmem %s4, %s360
        %v363 = vld [vmem:[#allocation2] sm:$0xf]
        %v364 = vld [vmem:[%s303] sm:$0xf]
        %v365 = vld [vmem:[%s303 + $0x4] sm:$0xf]
        %v366 = vld [vmem:[%s303 + $0x8] sm:$0xf]
        %v367 = vld [vmem:[%s303 + $0xc] sm:$0xf]
        %v368 = vld [vmem:[%s303 + $0x10] sm:$0xf]
        %v369 = vld [vmem:[%s303 + $0x14] sm:$0xf]
        %v370 = vld [vmem:[%s303 + $0x18] sm:$0xf]
        %v371 = vld [vmem:[%s303 + $0x1c] sm:$0xf]
        %v372 = vld [vmem:[%s303 + $0x20] sm:$0xf]
        %v373 = vld [vmem:[%s303 + $0x24] sm:$0xf]
        %v374 = vld [vmem:[%s303 + $0x28] sm:$0xf]
        %v375 = vld [vmem:[%s303 + $0x2c] sm:$0xf]
        %v376 = vld [vmem:[%s303 + $0x30] sm:$0xf]
        %v377 = vld [vmem:[%s303 + $0x34] sm:$0xf]
        %v378 = vld [vmem:[%s303 + $0x38] sm:$0xf]
        %v379 = vld [vmem:[%s303 + $0x3c] sm:$0xf]
        %v380 = vld [vmem:[%s311] sm:$0x1]
        %v382 = vlaneseq
        %v383 = vshrl.u32 %v382, 7
        %v384 = vsub.s32 0, %v383
        %v385 = vrot.slane %v380, %v384
        %v403 = vunpack.c.l.b16 %v364
        %v404 = vunpack.c.l.b16 %v365
        %v405 = vunpack.c.l.b16 %v366
        %v406 = vunpack.c.l.b16 %v367
        %v407 = vunpack.c.l.b16 %v368
        %v408 = vunpack.c.l.b16 %v369
        %v409 = vunpack.c.l.b16 %v370
        %v410 = vunpack.c.l.b16 %v371
        %v411 = vunpack.c.l.b16 %v372
        %v412 = vunpack.c.l.b16 %v373
        %v413 = vunpack.c.l.b16 %v374
        %v414 = vunpack.c.l.b16 %v375
        %v415 = vunpack.c.l.b16 %v376
        %v416 = vunpack.c.l.b16 %v377
        %v417 = vunpack.c.l.b16 %v378
        %v418 = vunpack.c.l.b16 %v379
        %v419 = vpack.c.b16 %v404, %v403
        %v420 = vpack.c.b16 %v406, %v405
        %v421 = vpack.c.b16 %v408, %v407
        %v422 = vpack.c.b16 %v410, %v409
        %v423 = vpack.c.b16 %v412, %v411
        %v424 = vpack.c.b16 %v414, %v413
        %v425 = vpack.c.b16 %v416, %v415
        %v426 = vpack.c.b16 %v418, %v417
        %435 = vmatprep.subr.bf16.mxu0 0
        %436 = vmatpush1.bf16.msra.mxu0 %v419
        %437 = vmatprep.subr.bf16.mxu0 0
        %438 = vmatpush1.bf16.msra.mxu0 %v420
        %439 = vmatprep.subr.bf16.mxu0 0
        %440 = vmatpush1.bf16.msra.mxu0 %v421
        %441 = vmatprep.subr.bf16.mxu0 0
        %442 = vmatpush1.bf16.msra.mxu0 %v422
        %443 = vmatprep.subr.bf16.mxu0 0
        %444 = vmatpush1.bf16.msra.mxu0 %v423
        %445 = vmatprep.subr.bf16.mxu0 0
        %446 = vmatpush1.bf16.msra.mxu0 %v424
        %447 = vmatprep.subr.bf16.mxu0 0
        %448 = vmatpush1.bf16.msra.mxu0 %v425
        %449 = vmatprep.subr.bf16.mxu0 0
        %450 = vmatpush1.bf16.msra.mxu0 %v426
        %451 = vmatprep.subr.bf16.mxu0 0
        %452 = vmatpush1.bf16.msra.mxu0 0
        %453 = vmatprep.subr.bf16.mxu0 0
        %454 = vmatpush1.bf16.msra.mxu0 0
        %455 = vmatprep.subr.bf16.mxu0 0
        %456 = vmatpush1.bf16.msra.mxu0 0
        %457 = vmatprep.subr.bf16.mxu0 0
        %458 = vmatpush1.bf16.msra.mxu0 0
        %459 = vmatprep.subr.bf16.mxu0 0
        %460 = vmatpush1.bf16.msra.mxu0 0
        %461 = vmatprep.subr.bf16.mxu0 0
        %462 = vmatpush1.bf16.msra.mxu0 0
        %463 = vmatprep.subr.bf16.mxu0 0
        %464 = vmatpush1.bf16.msra.mxu0 0
        %465 = vmatprep.subr.bf16.mxu0 0
        %466 = vmatpush1.bf16.msra.mxu0 0
        %467 = vmatprep.mubr.bf16.mxu0 0
        %468 = vmatmul.mubr.bf16.gmra.mrb[0].mxu0 %v363
        %v469 = vpop.f32.mrb[0].mxu0
        %v470 = vadd.f32 %v385, %v469
        %v471 = vpop.f32.mrb[0].mxu0
        %v472 = vpop.f32.mrb[0].mxu0
        %v473 = vpop.f32.mrb[0].mxu0
        %474 = vdwg.mxu0
        %v475 = vmax.f32 %v470, 0.0
        %v476 = vpack.c.bf16 %v475, %v475
        %v477 = vld [vmem:[%s320] sm:$0xf]
        %v478 = vld [vmem:[%s320 + $0x4] sm:$0xf]
        %v479 = vld [vmem:[%s320 + $0x8] sm:$0xf]
        %v480 = vld [vmem:[%s320 + $0xc] sm:$0xf]
        %v481 = vld [vmem:[%s320 + $0x10] sm:$0xf]
        %v482 = vld [vmem:[%s320 + $0x14] sm:$0xf]
        %v483 = vld [vmem:[%s320 + $0x18] sm:$0xf]
        %v484 = vld [vmem:[%s320 + $0x1c] sm:$0xf]
        %v485 = vld [vmem:[%s320 + $0x20] sm:$0xf]
        %v486 = vld [vmem:[%s320 + $0x24] sm:$0xf]
        %v487 = vld [vmem:[%s320 + $0x28] sm:$0xf]
        %v488 = vld [vmem:[%s320 + $0x2c] sm:$0xf]
        %v489 = vld [vmem:[%s320 + $0x30] sm:$0xf]
        %v490 = vld [vmem:[%s320 + $0x34] sm:$0xf]
        %v491 = vld [vmem:[%s320 + $0x38] sm:$0xf]
        %v492 = vld [vmem:[%s320 + $0x3c] sm:$0xf]
        %v493 = vld [vmem:[%s361] sm:$0x1]
        %v495 = vlaneseq
        %v496 = vshrl.u32 %v495, 7
        %v497 = vsub.s32 0, %v496
        %v498 = vrot.slane %v493, %v497
        %v516 = vunpack.c.l.b16 %v477
        %v517 = vunpack.c.l.b16 %v478
        %v518 = vunpack.c.l.b16 %v479
        %v519 = vunpack.c.l.b16 %v480
        %v520 = vunpack.c.l.b16 %v481
        %v521 = vunpack.c.l.b16 %v482
        %v522 = vunpack.c.l.b16 %v483
        %v523 = vunpack.c.l.b16 %v484
        %v524 = vunpack.c.l.b16 %v485
        %v525 = vunpack.c.l.b16 %v486
        %v526 = vunpack.c.l.b16 %v487
        %v527 = vunpack.c.l.b16 %v488
        %v528 = vunpack.c.l.b16 %v489
        %v529 = vunpack.c.l.b16 %v490
        %v530 = vunpack.c.l.b16 %v491
        %v531 = vunpack.c.l.b16 %v492
        %v532 = vpack.c.b16 %v517, %v516
        %v533 = vpack.c.b16 %v519, %v518
        %v534 = vpack.c.b16 %v521, %v520
        %v535 = vpack.c.b16 %v523, %v522
        %v536 = vpack.c.b16 %v525, %v524
        %v537 = vpack.c.b16 %v527, %v526
        %v538 = vpack.c.b16 %v529, %v528
        %v539 = vpack.c.b16 %v531, %v530
        %548 = vmatprep.subr.bf16.mxu0 0
        %549 = vmatpush1.bf16.msra.mxu0 %v532
        %550 = vmatprep.subr.bf16.mxu0 0
        %551 = vmatpush1.bf16.msra.mxu0 %v533
        %552 = vmatprep.subr.bf16.mxu0 0
        %553 = vmatpush1.bf16.msra.mxu0 %v534
        %554 = vmatprep.subr.bf16.mxu0 0
        %555 = vmatpush1.bf16.msra.mxu0 %v535
        %556 = vmatprep.subr.bf16.mxu0 0
        %557 = vmatpush1.bf16.msra.mxu0 %v536
        %558 = vmatprep.subr.bf16.mxu0 0
        %559 = vmatpush1.bf16.msra.mxu0 %v537
        %560 = vmatprep.subr.bf16.mxu0 0
        %561 = vmatpush1.bf16.msra.mxu0 %v538
        %562 = vmatprep.subr.bf16.mxu0 0
        %563 = vmatpush1.bf16.msra.mxu0 %v539
        %564 = vmatprep.subr.bf16.mxu0 0
        %565 = vmatpush1.bf16.msra.mxu0 0
        %566 = vmatprep.subr.bf16.mxu0 0
        %567 = vmatpush1.bf16.msra.mxu0 0
        %568 = vmatprep.subr.bf16.mxu0 0
        %569 = vmatpush1.bf16.msra.mxu0 0
        %570 = vmatprep.subr.bf16.mxu0 0
        %571 = vmatpush1.bf16.msra.mxu0 0
        %572 = vmatprep.subr.bf16.mxu0 0
        %573 = vmatpush1.bf16.msra.mxu0 0
        %574 = vmatprep.subr.bf16.mxu0 0
        %575 = vmatpush1.bf16.msra.mxu0 0
        %576 = vmatprep.subr.bf16.mxu0 0
        %577 = vmatpush1.bf16.msra.mxu0 0
        %578 = vmatprep.subr.bf16.mxu0 0
        %579 = vmatpush1.bf16.msra.mxu0 0
        %580 = vmatprep.mubr.bf16.mxu0 0
        %581 = vmatmul.mubr.bf16.gmra.mrb[0].mxu0 %v476
        %v582 = vpop.f32.mrb[0].mxu0
        %v583 = vadd.f32 %v498, %v582
        %v584 = vpop.f32.mrb[0].mxu0
        %v585 = vpop.f32.mrb[0].mxu0
        %v586 = vpop.f32.mrb[0].mxu0
        %587 = vdwg.mxu0
        %588 = vst [vmem:[%s358] sm:$0xff] %v583
        %s589 = sand.u32 %s178, 1
        %s590 = scalar_lea.sflag [#allocation4], %s589
        %s591 = sand.u32 %s178, 1
        %s592 = smul.addr %s591, 8
        %s593 = scalar_lea.vmem [#allocation10], %s592
        // Predicated region
        $region57: #{tpu_custom_call.1} parent=39 // pred_check
          %p594 = pneg %p188
        $region58: #{tpu_custom_call.1} parent=39 // pred_check_branch
          %596 = sbr.rel (%p594) target = $region60
        $region59: #{tpu_custom_call.1} parent=39 // pred_region
          %s598 = ssub.s32 128, 128
          %599 = vsyncadd %s590, %s598
          %s600 = sadd.s32 %s31, %s30
          %s601 = smul.addr %s600, 128
          %s602 = scalar_lea.hbm %s5, %s601
          %s604 = sshll.u32 %s593, 4
          %s605 = int_to_ptr.vmem [resolvable:$true] %s604
          %607 = dma.vmem_to_hbm [thread:$0]  %s605, 128, %s602, %s590
        $region60: #{tpu_custom_call.1} parent=39 // pred_fallthru
          _
      $region40: #{tpu_custom_call.1} parent=5 // pred_fallthru
        _
      %p608 = scmp.le.s32.totalorder 2, %s21
      // Predicated region
      $region61: #{tpu_custom_call.1} parent=5 // pred_check
        %p609 = pneg %p608
      $region62: #{tpu_custom_call.1} parent=5 // pred_check_branch
        %611 = sbr.rel (%p609) target = $region64
      $region63: #{tpu_custom_call.1} parent=5 // pred_region
        %s612 = ssub.s32 %s21, 2
        // Predicated region
        $region65: #{tpu_custom_call.1} parent=63 // pred_check
          %p613 = pneg %p194
        $region66: #{tpu_custom_call.1} parent=63 // pred_check_branch
          %615 = sbr.rel (%p613) target = $region68
        $region67: #{tpu_custom_call.1} parent=63 // pred_region
          %s616 = sand.u32 %s179, 1
          %s617 = scalar_lea.sflag [#allocation4], %s616
          %s618 = sand.u32 %s179, 1
          %s619 = smul.addr %s618, 8
          %s620 = scalar_lea.vmem [#allocation10], %s619
          %621 = dma.done %s617, 128
        $region68: #{tpu_custom_call.1} parent=63 // pred_fallthru
          _
      $region64: #{tpu_custom_call.1} parent=5 // pred_fallthru
        _
    $region6: #{tpu_custom_call.1} parent=1 // loop_footer
      %s25 = sadd.s32 1, %s21
    $region7: #{tpu_custom_call.1} parent=1 // loop_footer_branch
      %20 = sbr.rel target = $region3
    $region8: #{tpu_custom_call.1} parent=1 // loop_exit
      _
    %622 = vsyncpa [#allocation3], 1
    %s623 = scalar_lea.sflag [#allocation3], 1
    %624 = vsyncpa %s623, 1
    %625 = vsyncpa [#allocation6], 1
    %s626 = scalar_lea.sflag [#allocation6], 1
    %627 = vsyncpa %s626, 1
    %628 = vsyncpa [#allocation9], 1
    %s629 = scalar_lea.sflag [#allocation9], 1
    %630 = vsyncpa %s629, 1
    %631 = vsyncpa [#allocation4], 1
    %s632 = scalar_lea.sflag [#allocation4], 1
    %633 = vsyncpa %s632, 1

</llo_original>
